<compile_context>
chip_gen: v7x
topology: tpu7x:2x2x1
jax: 0.10.0
libtpu: 0.0.40
codegen_flags: <defaults>
</compile_context>

<pallas_src>
import functools

import jax
import jax.numpy as jnp
from jax.experimental import pallas as pl
from jax.experimental.pallas import tpu as pltpu

SMOOTH = 0.6


def _vmem_budgets():
    """(input_tile_budget_bytes, vmem_limit_bytes), sized per TPU generation."""
    try:
        cap = int(getattr(pltpu.get_tpu_info(), "vmem_capacity_bytes"))
    except Exception:
        cap = 64 * 1024 * 1024  # conservative fallback (v7x-sized VMEM)
    in_budget = int(cap * 0.35)                      # 2 inputs x 2 pipeline buffers
    limit = min(cap - (8 << 20), in_budget + (16 << 20))
    limit = max(int(limit), 32 << 20)
    return int(in_budget), int(limit)


_INPUT_VMEM_BUDGET, _VMEM_LIMIT_BYTES = _vmem_budgets()


def _pick_tile_d(d, n, in_itemsize, tgt_itemsize):
    """Largest lane-aligned reduction tile that fits the input VMEM budget."""
    n_sub = ((n + 7) // 8) * 8                       # sublane-padded rows in VMEM
    per_128 = 2 * n_sub * 128 * (in_itemsize + tgt_itemsize)   # 2 buffers, both inputs
    max_cols = max(1, _INPUT_VMEM_BUDGET // per_128)
    d_aligned = ((d + 127) // 128) * 128
    return int(min(max_cols * 128, d_aligned))


def _dice_partial_kernel(inp_ref, tgt_ref, inter_ref, sx_ref, st_ref, *, td, d):
    """Grid: (parallel chunk p, tile-within-chunk i).

    inp_ref / tgt_ref : (N, td) VMEM tiles of the flattened inputs (native dtype).
    inter_ref/sx_ref/st_ref : (1, N, 1) per-chunk partial sums; the output block
        index depends only on p, so the block is resident across i and acts as
        the accumulator (init at i == 0).
    """
    p = pl.program_id(0)
    i = pl.program_id(1)
    g = p * pl.num_programs(1) + i          # global tile index along D

    @pl.when(i == 0)
    def _init():
        inter_ref[...] = jnp.zeros_like(inter_ref)
        sx_ref[...] = jnp.zeros_like(sx_ref)
        st_ref[...] = jnp.zeros_like(st_ref)

    x_raw = inp_ref[...]
    t_raw = tgt_ref[...]

    def accumulate(x, t):
        inter_ref[0] += jnp.sum(x * t, axis=1, keepdims=True)
        sx_ref[0] += jnp.sum(x, axis=1, keepdims=True)
        st_ref[0] += jnp.sum(t, axis=1, keepdims=True)

    # Only the tail tile (and any overhanging tiles from the parallel split)
    # needs lane masking; full tiles take the cheap unmasked path.
    is_full = (g * td + td) <= d

    @pl.when(is_full)
    def _full():
        accumulate(x_raw.astype(jnp.float32), t_raw.astype(jnp.float32))

    @pl.when(jnp.logical_not(is_full))
    def _tail():
        col = jax.lax.broadcasted_iota(jnp.int32, x_raw.shape, 1) + g * td
        valid = col < d
        x = jnp.where(valid, x_raw.astype(jnp.float32), 0.0)
        t = jnp.where(valid, t_raw.astype(jnp.float32), 0.0)
        accumulate(x, t)


@jax.jit
def binary_dice_loss(inputs, targets):
    """Computes BinaryDiceLoss.forward(inputs, targets) with a Pallas kernel."""
    n = targets.shape[0]
    inp_flat = inputs.reshape(n, -1)        # free reshape, no data movement
    tgt_flat = targets.reshape(n, -1)
    d = inp_flat.shape[1]

    td = _pick_tile_d(d, n, inp_flat.dtype.itemsize, tgt_flat.dtype.itemsize)
    g_total = pl.cdiv(d, td)                # tiles covering D (no host padding)
    g_par = 2 if g_total >= 2 else 1        # feeds both TensorCores on v7x
    g_in = pl.cdiv(g_total, g_par)

    def in_map(p_idx, i_idx):
        # Clamp so overhanging (p, i) pairs re-read the last tile; the kernel's
        # lane mask zeroes their contribution.
        return (0, jnp.minimum(p_idx * g_in + i_idx, g_total - 1))

    out_map = lambda p_idx, i_idx: (p_idx, 0, 0)
    part_shape = jax.ShapeDtypeStruct((g_par, n, 1), jnp.float32)

    kernel = functools.partial(_dice_partial_kernel, td=td, d=d)

    inter_p, sx_p, st_p = pl.pallas_call(
        kernel,
        out_shape=(part_shape, part_shape, part_shape),
        grid_spec=pltpu.PrefetchScalarGridSpec(
            num_scalar_prefetch=0,
            grid=(g_par, g_in),
            in_specs=[
                pl.BlockSpec((n, td), in_map),
                pl.BlockSpec((n, td), in_map),
            ],
            out_specs=[
                pl.BlockSpec((1, n, 1), out_map),
                pl.BlockSpec((1, n, 1), out_map),
                pl.BlockSpec((1, n, 1), out_map),
            ],
        ),
        compiler_params=pltpu.CompilerParams(
            dimension_semantics=("parallel", "arbitrary"),
            vmem_limit_bytes=_VMEM_LIMIT_BYTES,
        ),
    )(inp_flat, tgt_flat)

    # Tiny finalize in plain JAX (cross-chunk reduce + dice).
    inter = jnp.sum(inter_p, axis=0)[:, 0]
    sx = jnp.sum(sx_p, axis=0)[:, 0]
    st = jnp.sum(st_p, axis=0)[:, 0]
    dice = (2.0 * inter + SMOOTH) / (sx + st + SMOOTH)
    return 1.0 - jnp.sum(dice) / n


def _reference(inputs, targets):
    n = targets.shape[0]
    inp_flat = inputs.reshape(n, -1)
    tgt_flat = targets.reshape(n, -1)
    inter = jnp.sum(inp_flat * tgt_flat, axis=1)
    dice = (2.0 * inter + SMOOTH) / (
        jnp.sum(inp_flat, axis=1) + jnp.sum(tgt_flat, axis=1) + SMOOTH)
    return 1.0 - jnp.sum(dice) / n


if __name__ == "__main__":
    key = jax.random.PRNGKey(0)
    k1, k2 = jax.random.split(key)

    # NCHW, matching the PyTorch convention: batch=2, channels=4, 16x16 spatial.
    x = jax.nn.sigmoid(jax.random.normal(k1, (2, 4, 16, 16), jnp.float32))
    t = (jax.random.uniform(k2, (2, 4, 16, 16)) > 0.5).astype(jnp.float32)

    loss = binary_dice_loss(x, t)
    jax.block_until_ready(loss)

    ref = _reference(x, t)
    assert jnp.allclose(loss, ref, atol=1e-5, rtol=1e-4), (loss, ref)
    print("KERNEL_OK")
</pallas_src>

<mosaic_0001>
module attributes {stable_mosaic.version = 11 : i64} {
  func.func @_dice_partial_kernel(%arg0: i32, %arg1: i32, %arg2: memref<2x1024xf32, #tpu.memory_space<vmem>>, %arg3: memref<2x1024xf32, #tpu.memory_space<vmem>>, %arg4: memref<1x2x1xf32, #tpu.memory_space<vmem>>, %arg5: memref<1x2x1xf32, #tpu.memory_space<vmem>>, %arg6: memref<1x2x1xf32, #tpu.memory_space<vmem>>) attributes {dimension_semantics = [#tpu.dimension_semantics<parallel>, #tpu.dimension_semantics<arbitrary>], iteration_bounds = array<i64: 1, 1>, scalar_prefetch = 0 : i64, scratch_operands = 0 : i64, tpu.core_type = #tpu.core_type<tc>, window_params = [{transform_indices = @transform_0, window_bounds = array<i64: 2, 1024>}, {transform_indices = @transform_1, window_bounds = array<i64: 2, 1024>}, {transform_indices = @transform_2, window_bounds = array<i64: 1, 2, 1>}, {transform_indices = @transform_3, window_bounds = array<i64: 1, 2, 1>}, {transform_indices = @transform_4, window_bounds = array<i64: 1, 2, 1>}]} {
    %c1_i32 = arith.constant 1 : i32
    %0 = arith.muli %arg0, %c1_i32 : i32
    %1 = arith.addi %0, %arg1 : i32
    %c0_i32 = arith.constant 0 : i32
    %2 = arith.cmpi eq, %arg1, %c0_i32 : i32
    %3 = arith.extui %2 : i1 to i32
    %c0_i32_0 = arith.constant 0 : i32
    %4 = arith.cmpi ne, %3, %c0_i32_0 : i32
    scf.if %4 {
      %cst = arith.constant 0.000000e+00 : f32
      %15 = vector.broadcast %cst : f32 to vector<1x2x1xf32>
      %c0_8 = arith.constant 0 : index
      %c0_9 = arith.constant 0 : index
      %c0_10 = arith.constant 0 : index
      %16 = vector.load %arg4[%c0_8, %c0_9, %c0_10] : memref<1x2x1xf32, #tpu.memory_space<vmem>>, vector<1x2x1xf32>
      tpu.vector_store %arg4[%c0_8, %c0_9, %c0_10], %15 {strides = array<i32>} : memref<1x2x1xf32, #tpu.memory_space<vmem>>, vector<1x2x1xf32>,
      %cst_11 = arith.constant 0.000000e+00 : f32
      %17 = vector.broadcast %cst_11 : f32 to vector<1x2x1xf32>
      %c0_12 = arith.constant 0 : index
      %c0_13 = arith.constant 0 : index
      %c0_14 = arith.constant 0 : index
      %18 = vector.load %arg5[%c0_12, %c0_13, %c0_14] : memref<1x2x1xf32, #tpu.memory_space<vmem>>, vector<1x2x1xf32>
      tpu.vector_store %arg5[%c0_12, %c0_13, %c0_14], %17 {strides = array<i32>} : memref<1x2x1xf32, #tpu.memory_space<vmem>>, vector<1x2x1xf32>,
      %cst_15 = arith.constant 0.000000e+00 : f32
      %19 = vector.broadcast %cst_15 : f32 to vector<1x2x1xf32>
      %c0_16 = arith.constant 0 : index
      %c0_17 = arith.constant 0 : index
      %c0_18 = arith.constant 0 : index
      %20 = vector.load %arg6[%c0_16, %c0_17, %c0_18] : memref<1x2x1xf32, #tpu.memory_space<vmem>>, vector<1x2x1xf32>
      tpu.vector_store %arg6[%c0_16, %c0_17, %c0_18], %19 {strides = array<i32>} : memref<1x2x1xf32, #tpu.memory_space<vmem>>, vector<1x2x1xf32>,
    } else {
    }
    %c0 = arith.constant 0 : index
    %c0_1 = arith.constant 0 : index
    %5 = vector.load %arg2[%c0, %c0_1] : memref<2x1024xf32, #tpu.memory_space<vmem>>, vector<2x1024xf32>
    %c0_2 = arith.constant 0 : index
    %c0_3 = arith.constant 0 : index
    %6 = vector.load %arg3[%c0_2, %c0_3] : memref<2x1024xf32, #tpu.memory_space<vmem>>, vector<2x1024xf32>
    %c1024_i32 = arith.constant 1024 : i32
    %7 = arith.muli %1, %c1024_i32 : i32
    %c1024_i32_4 = arith.constant 1024 : i32
    %8 = arith.addi %7, %c1024_i32_4 : i32
    %c1024_i32_5 = arith.constant 1024 : i32
    %9 = arith.cmpi sle, %8, %c1024_i32_5 : i32
    %10 = arith.extui %9 : i1 to i32
    %c0_i32_6 = arith.constant 0 : i32
    %11 = arith.cmpi ne, %10, %c0_i32_6 : i32
    scf.if %11 {
      %c0_8 = arith.constant 0 : index
      %c0_9 = arith.constant 0 : index
      %c0_10 = arith.constant 0 : index
      %15 = vector.load %arg4[%c0_8, %c0_9, %c0_10] : memref<1x2x1xf32, #tpu.memory_space<vmem>>, vector<1x2x1xf32>
      %16 = vector.shape_cast %15 : vector<1x2x1xf32> to vector<2x1xf32>
      %17 = arith.mulf %5, %6 : vector<2x1024xf32>
      %cst = arith.constant dense<0.000000e+00> : vector<2xf32>
      %18 = vector.multi_reduction <add>, %17, %cst [1] : vector<2x1024xf32> to vector<2xf32>
      %19 = vector.shape_cast %18 : vector<2xf32> to vector<2x1xf32>
      %20 = arith.addf %16, %19 : vector<2x1xf32>
      %c0_11 = arith.constant 0 : index
      %c0_12 = arith.constant 0 : index
      %c0_13 = arith.constant 0 : index
      %21 = vector.load %arg4[%c0_11, %c0_12, %c0_13] : memref<1x2x1xf32, #tpu.memory_space<vmem>>, vector<1x2x1xf32>
      %22 = vector.shape_cast %21 : vector<1x2x1xf32> to vector<2x1xf32>
      %23 = vector.shape_cast %20 : vector<2x1xf32> to vector<1x2x1xf32>
      tpu.vector_store %arg4[%c0_11, %c0_12, %c0_13], %23 {strides = array<i32>} : memref<1x2x1xf32, #tpu.memory_space<vmem>>, vector<1x2x1xf32>,
      %c0_14 = arith.constant 0 : index
      %c0_15 = arith.constant 0 : index
      %c0_16 = arith.constant 0 : index
      %24 = vector.load %arg5[%c0_14, %c0_15, %c0_16] : memref<1x2x1xf32, #tpu.memory_space<vmem>>, vector<1x2x1xf32>
      %25 = vector.shape_cast %24 : vector<1x2x1xf32> to vector<2x1xf32>
      %cst_17 = arith.constant dense<0.000000e+00> : vector<2xf32>
      %26 = vector.multi_reduction <add>, %5, %cst_17 [1] : vector<2x1024xf32> to vector<2xf32>
      %27 = vector.shape_cast %26 : vector<2xf32> to vector<2x1xf32>
      %28 = arith.addf %25, %27 : vector<2x1xf32>
      %c0_18 = arith.constant 0 : index
      %c0_19 = arith.constant 0 : index
      %c0_20 = arith.constant 0 : index
      %29 = vector.load %arg5[%c0_18, %c0_19, %c0_20] : memref<1x2x1xf32, #tpu.memory_space<vmem>>, vector<1x2x1xf32>
      %30 = vector.shape_cast %29 : vector<1x2x1xf32> to vector<2x1xf32>
      %31 = vector.shape_cast %28 : vector<2x1xf32> to vector<1x2x1xf32>
      tpu.vector_store %arg5[%c0_18, %c0_19, %c0_20], %31 {strides = array<i32>} : memref<1x2x1xf32, #tpu.memory_space<vmem>>, vector<1x2x1xf32>,
      %c0_21 = arith.constant 0 : index
      %c0_22 = arith.constant 0 : index
      %c0_23 = arith.constant 0 : index
      %32 = vector.load %arg6[%c0_21, %c0_22, %c0_23] : memref<1x2x1xf32, #tpu.memory_space<vmem>>, vector<1x2x1xf32>
      %33 = vector.shape_cast %32 : vector<1x2x1xf32> to vector<2x1xf32>
      %cst_24 = arith.constant dense<0.000000e+00> : vector<2xf32>
      %34 = vector.multi_reduction <add>, %6, %cst_24 [1] : vector<2x1024xf32> to vector<2xf32>
      %35 = vector.shape_cast %34 : vector<2xf32> to vector<2x1xf32>
      %36 = arith.addf %33, %35 : vector<2x1xf32>
      %c0_25 = arith.constant 0 : index
      %c0_26 = arith.constant 0 : index
      %c0_27 = arith.constant 0 : index
      %37 = vector.load %arg6[%c0_25, %c0_26, %c0_27] : memref<1x2x1xf32, #tpu.memory_space<vmem>>, vector<1x2x1xf32>
      %38 = vector.shape_cast %37 : vector<1x2x1xf32> to vector<2x1xf32>
      %39 = vector.shape_cast %36 : vector<2x1xf32> to vector<1x2x1xf32>
      tpu.vector_store %arg6[%c0_25, %c0_26, %c0_27], %39 {strides = array<i32>} : memref<1x2x1xf32, #tpu.memory_space<vmem>>, vector<1x2x1xf32>,
    } else {
    }
    %true = arith.constant true
    %12 = arith.xori %9, %true : i1
    %13 = arith.extui %12 : i1 to i32
    %c0_i32_7 = arith.constant 0 : i32
    %14 = arith.cmpi ne, %13, %c0_i32_7 : i32
    scf.if %14 {
      %15 = tpu.iota {dimensions = array<i32: 1>} : vector<2x1024xi32>
      %c1024_i32_8 = arith.constant 1024 : i32
      %16 = arith.muli %1, %c1024_i32_8 : i32
      %17 = vector.broadcast %16 : i32 to vector<2x1024xi32>
      %18 = arith.addi %15, %17 : vector<2x1024xi32>
      %c1024_i32_9 = arith.constant 1024 : i32
      %19 = vector.broadcast %c1024_i32_9 : i32 to vector<2x1024xi32>
      %20 = arith.cmpi slt, %18, %19 : vector<2x1024xi32>
      %cst = arith.constant 0.000000e+00 : f32
      %21 = vector.broadcast %cst : f32 to vector<2x1024xf32>
      %22 = arith.select %20, %5, %21 : vector<2x1024xi1>, vector<2x1024xf32>
      %cst_10 = arith.constant 0.000000e+00 : f32
      %23 = vector.broadcast %cst_10 : f32 to vector<2x1024xf32>
      %24 = arith.select %20, %6, %23 : vector<2x1024xi1>, vector<2x1024xf32>
      %c0_11 = arith.constant 0 : index
      %c0_12 = arith.constant 0 : index
      %c0_13 = arith.constant 0 : index
      %25 = vector.load %arg4[%c0_11, %c0_12, %c0_13] : memref<1x2x1xf32, #tpu.memory_space<vmem>>, vector<1x2x1xf32>
      %26 = vector.shape_cast %25 : vector<1x2x1xf32> to vector<2x1xf32>
      %27 = arith.mulf %22, %24 : vector<2x1024xf32>
      %cst_14 = arith.constant dense<0.000000e+00> : vector<2xf32>
      %28 = vector.multi_reduction <add>, %27, %cst_14 [1] : vector<2x1024xf32> to vector<2xf32>
      %29 = vector.shape_cast %28 : vector<2xf32> to vector<2x1xf32>
      %30 = arith.addf %26, %29 : vector<2x1xf32>
      %c0_15 = arith.constant 0 : index
      %c0_16 = arith.constant 0 : index
      %c0_17 = arith.constant 0 : index
      %31 = vector.load %arg4[%c0_15, %c0_16, %c0_17] : memref<1x2x1xf32, #tpu.memory_space<vmem>>, vector<1x2x1xf32>
      %32 = vector.shape_cast %31 : vector<1x2x1xf32> to vector<2x1xf32>
      %33 = vector.shape_cast %30 : vector<2x1xf32> to vector<1x2x1xf32>
      tpu.vector_store %arg4[%c0_15, %c0_16, %c0_17], %33 {strides = array<i32>} : memref<1x2x1xf32, #tpu.memory_space<vmem>>, vector<1x2x1xf32>,
      %c0_18 = arith.constant 0 : index
      %c0_19 = arith.constant 0 : index
      %c0_20 = arith.constant 0 : index
      %34 = vector.load %arg5[%c0_18, %c0_19, %c0_20] : memref<1x2x1xf32, #tpu.memory_space<vmem>>, vector<1x2x1xf32>
      %35 = vector.shape_cast %34 : vector<1x2x1xf32> to vector<2x1xf32>
      %cst_21 = arith.constant dense<0.000000e+00> : vector<2xf32>
      %36 = vector.multi_reduction <add>, %22, %cst_21 [1] : vector<2x1024xf32> to vector<2xf32>
      %37 = vector.shape_cast %36 : vector<2xf32> to vector<2x1xf32>
      %38 = arith.addf %35, %37 : vector<2x1xf32>
      %c0_22 = arith.constant 0 : index
      %c0_23 = arith.constant 0 : index
      %c0_24 = arith.constant 0 : index
      %39 = vector.load %arg5[%c0_22, %c0_23, %c0_24] : memref<1x2x1xf32, #tpu.memory_space<vmem>>, vector<1x2x1xf32>
      %40 = vector.shape_cast %39 : vector<1x2x1xf32> to vector<2x1xf32>
      %41 = vector.shape_cast %38 : vector<2x1xf32> to vector<1x2x1xf32>
      tpu.vector_store %arg5[%c0_22, %c0_23, %c0_24], %41 {strides = array<i32>} : memref<1x2x1xf32, #tpu.memory_space<vmem>>, vector<1x2x1xf32>,
      %c0_25 = arith.constant 0 : index
      %c0_26 = arith.constant 0 : index
      %c0_27 = arith.constant 0 : index
      %42 = vector.load %arg6[%c0_25, %c0_26, %c0_27] : memref<1x2x1xf32, #tpu.memory_space<vmem>>, vector<1x2x1xf32>
      %43 = vector.shape_cast %42 : vector<1x2x1xf32> to vector<2x1xf32>
      %cst_28 = arith.constant dense<0.000000e+00> : vector<2xf32>
      %44 = vector.multi_reduction <add>, %24, %cst_28 [1] : vector<2x1024xf32> to vector<2xf32>
      %45 = vector.shape_cast %44 : vector<2xf32> to vector<2x1xf32>
      %46 = arith.addf %43, %45 : vector<2x1xf32>
      %c0_29 = arith.constant 0 : index
      %c0_30 = arith.constant 0 : index
      %c0_31 = arith.constant 0 : index
      %47 = vector.load %arg6[%c0_29, %c0_30, %c0_31] : memref<1x2x1xf32, #tpu.memory_space<vmem>>, vector<1x2x1xf32>
      %48 = vector.shape_cast %47 : vector<1x2x1xf32> to vector<2x1xf32>
      %49 = vector.shape_cast %46 : vector<2x1xf32> to vector<1x2x1xf32>
      tpu.vector_store %arg6[%c0_29, %c0_30, %c0_31], %49 {strides = array<i32>} : memref<1x2x1xf32, #tpu.memory_space<vmem>>, vector<1x2x1xf32>,
    } else {
    }
    return
  }
  func.func @transform_0(%arg0: i32, %arg1: i32) -> (i32, i32) {
    %c1_i32 = arith.constant 1 : i32
    %0 = arith.muli %arg0, %c1_i32 : i32
    %1 = arith.addi %0, %arg1 : i32
    %c0_i32 = arith.constant 0 : i32
    %2 = arith.minsi %1, %c0_i32 : i32
    %c0_i32_0 = arith.constant 0 : i32
    %c0_i32_1 = arith.constant 0 : i32
    return %c0_i32_0, %2 : i32, i32
  }
  func.func @transform_1(%arg0: i32, %arg1: i32) -> (i32, i32) {
    %c1_i32 = arith.constant 1 : i32
    %0 = arith.muli %arg0, %c1_i32 : i32
    %1 = arith.addi %0, %arg1 : i32
    %c0_i32 = arith.constant 0 : i32
    %2 = arith.minsi %1, %c0_i32 : i32
    %c0_i32_0 = arith.constant 0 : i32
    %c0_i32_1 = arith.constant 0 : i32
    return %c0_i32_0, %2 : i32, i32
  }
  func.func @transform_2(%arg0: i32, %arg1: i32) -> (i32, i32, i32) {
    %c0_i32 = arith.constant 0 : i32
    %c0_i32_0 = arith.constant 0 : i32
    %c0_i32_1 = arith.constant 0 : i32
    return %arg0, %c0_i32, %c0_i32_0 : i32, i32, i32
  }
  func.func @transform_3(%arg0: i32, %arg1: i32) -> (i32, i32, i32) {
    %c0_i32 = arith.constant 0 : i32
    %c0_i32_0 = arith.constant 0 : i32
    %c0_i32_1 = arith.constant 0 : i32
    return %arg0, %c0_i32, %c0_i32_0 : i32, i32, i32
  }
  func.func @transform_4(%arg0: i32, %arg1: i32) -> (i32, i32, i32) {
    %c0_i32 = arith.constant 0 : i32
    %c0_i32_0 = arith.constant 0 : i32
    %c0_i32_1 = arith.constant 0 : i32
    return %arg0, %c0_i32, %c0_i32_0 : i32, i32, i32
  }
}

</mosaic_0001>

<llo_original>
// kernel: binary_dice_loss.1
$region0: #{binary_dice_loss.1}
  #allocation0 [shape = 'u32[]', space=smem, size = 0x4, offset = 0x4, fixed_abs, tag = 'smem constant byte address 0x4 - core index']
  #allocation1 [shape = 'u32[144,128]{1,0:T(1,128)}', space=vmem, size = 0x12000, scoped, tag = 'internal scratch']
  %s0 = inlined_call_operand.vmem [shape: f32[2,1024], index: 0, kind: input, shape index: {}]
  %s1 = inlined_call_operand.vmem [shape: f32[2,1024], index: 1, kind: input, shape index: {}]
  %s2 = inlined_call_operand.vmem [shape: f32[1,2,1], index: 2, kind: output, shape index: {0}]
  %s3 = inlined_call_operand.vmem [shape: f32[1,2,1], index: 3, kind: output, shape index: {1}]
  %s4 = inlined_call_operand.vmem [shape: f32[1,2,1], index: 4, kind: output, shape index: {2}]
  %5 = xla_tuple %s2, %s3, %s4
  %s6 = sld [smem:[#allocation0]]
  $region46: #{binary_dice_loss.1} parent=0
    _
  %s8 = ssub.s32 1, %s6
  %s9 = scalar_select 0, %s8, %s6
  // Predicated region
  $region2: #{binary_dice_loss.1} parent=0 // pred_check
    _
  $region3: #{binary_dice_loss.1} parent=0 // pred_check_branch
    %11 = sbr.rel (0) target = $region5
  $region4: #{binary_dice_loss.1} parent=0 // pred_region
    %s12 = sadd.s32 0, 0
    %p13 = scmp.lt.s32.totalorder %s12, 0
    %s14 = scalar_select %p13, %s12, 0
    %s15 = smul.u32 8, %s14
    %p16 = scmp.lt.s32.totalorder %s15, 7
    %s17 = scalar_select %p16, %s15, 7
    %s18 = smul.addr %s17, 2
    %s19 = scalar_lea.vmem %s0, %s18
    %s20 = sadd.s32 0, 0
    %p21 = scmp.lt.s32.totalorder %s20, 0
    %s22 = scalar_select %p21, %s20, 0
    %s23 = smul.u32 8, %s22
  $region5: #{binary_dice_loss.1} parent=0 // pred_fallthru
    _
  // Predicated region
  $region6: #{binary_dice_loss.1} parent=0 // pred_check
    _
  $region7: #{binary_dice_loss.1} parent=0 // pred_check_branch
    %25 = sbr.rel (0) target = $region9
  $region8: #{binary_dice_loss.1} parent=0 // pred_region
    %s26 = sadd.s32 0, 0
    %p27 = scmp.lt.s32.totalorder %s26, 0
    %s28 = scalar_select %p27, %s26, 0
    %s29 = smul.u32 8, %s28
    %p30 = scmp.lt.s32.totalorder %s29, 7
    %s31 = scalar_select %p30, %s29, 7
    %s32 = smul.addr %s31, 2
    %s33 = scalar_lea.vmem %s1, %s32
    %s34 = sadd.s32 0, 0
    %p35 = scmp.lt.s32.totalorder %s34, 0
    %s36 = scalar_select %p35, %s34, 0
    %s37 = smul.u32 8, %s36
  $region9: #{binary_dice_loss.1} parent=0 // pred_fallthru
    _
  %s38 = sadd.s32 0, 0
  %p39 = scmp.lt.s32.totalorder %s38, 0
  %s40 = scalar_select %p39, %s38, 0
  %s41 = smul.u32 8, %s40
  %p42 = scmp.lt.s32.totalorder %s41, 7
  %s43 = scalar_select %p42, %s41, 7
  %s44 = smul.addr %s43, 2
  %s45 = scalar_lea.vmem %s0, %s44
  %s46 = sadd.s32 0, 0
  %p47 = scmp.lt.s32.totalorder %s46, 0
  %s48 = scalar_select %p47, %s46, 0
  %s49 = smul.u32 8, %s48
  %p50 = scmp.lt.s32.totalorder %s49, 7
  %s51 = scalar_select %p50, %s49, 7
  %s52 = smul.addr %s51, 2
  %s53 = scalar_lea.vmem %s1, %s52
  %s54 = sadd.s32 0, 0
  %p55 = scmp.lt.s32.totalorder %s54, 0
  %s56 = scalar_select %p55, %s54, 0
  %s57 = smul.u32 8, %s56
  %p58 = scmp.lt.s32.totalorder %s57, 7
  %s59 = scalar_select %p58, %s57, 7
  %s60 = smul.addr %s59, 2
  %s61 = scalar_lea.vmem %s0, %s60
  %s62 = sadd.s32 0, 0
  %p63 = scmp.lt.s32.totalorder %s62, 0
  %s64 = scalar_select %p63, %s62, 0
  %s65 = smul.u32 8, %s64
  %s66 = sadd.s32 0, 0
  %p67 = scmp.lt.s32.totalorder %s66, 0
  %s68 = scalar_select %p67, %s66, 0
  %s69 = smul.u32 8, %s68
  %p70 = scmp.lt.s32.totalorder %s69, 7
  %s71 = scalar_select %p70, %s69, 7
  %s72 = smul.addr %s71, 2
  %s73 = scalar_lea.vmem %s1, %s72
  %s74 = sadd.s32 0, 0
  %p75 = scmp.lt.s32.totalorder %s74, 0
  %s76 = scalar_select %p75, %s74, 0
  %s77 = smul.u32 8, %s76
  %s78 = sadd.s32 0, 0
  %p79 = scmp.eq.s32.totalorder 0, 0
  // Predicated region
  $region10: #{binary_dice_loss.1} parent=0 // pred_check
    %p80 = pneg %p79
  $region11: #{binary_dice_loss.1} parent=0 // pred_check_branch
    %82 = sbr.rel (%p80) target = $region13
  $region12: #{binary_dice_loss.1} parent=0 // pred_region
    %vm83 = vcmask 1024
    %84 = vst.msk [vmem:[%s2] sm:$0x3] %vm83, 0.0
    %85 = vst.msk [vmem:[%s3] sm:$0x3] %vm83, 0.0
    %86 = vst.msk [vmem:[%s4] sm:$0x3] %vm83, 0.0
  $region13: #{binary_dice_loss.1} parent=0 // pred_fallthru
    _
  %v87 = vld [vmem:[%s61] sm:$0xff]
  %v88 = vld [vmem:[%s61 + $0x8] sm:$0xff]
  %v89 = vld [vmem:[%s73] sm:$0xff]
  %v90 = vld [vmem:[%s73 + $0x8] sm:$0xff]
  %s91 = smul.u32 %s78, 1024
  %s92 = sadd.s32 %s91, 1024
  %p93 = scmp.le.s32.totalorder %s92, 1024
  // Predicated region
  $region14: #{binary_dice_loss.1} parent=0 // pred_check
    %p94 = pneg %p93
  $region15: #{binary_dice_loss.1} parent=0 // pred_check_branch
    %96 = sbr.rel (%p94) target = $region17
  $region16: #{binary_dice_loss.1} parent=0 // pred_region
    %v97 = vld [vmem:[%s2] sm:$0x3]
    %v98 = vmul.f32 %v87, %v89
    %v99 = vmul.f32 %v88, %v90
    %v102 = vcombine.high %v98, %v98
    %v104 = vunpack.c.l.s4 1983009808
    %v105 = vunpack.c.0.s8 %v104
    %v106 = vlaneseq
    %v107 = vshrl.u32 %v106, 7
    %v108 = vsub.s32 %v105, %v107
    %v109 = vrot.slane %v98, %v108
    %v111 = vunpack.c.l.s4 1983009808
    %v112 = vunpack.c.0.s8 %v111
    %v113 = vlaneseq
    %v114 = vshrl.u32 %v113, 7
    %v115 = vsub.s32 %v112, %v114
    %v116 = vrot.slane %v102, %v115
    %v117 = vcombine.high %v109, %v109
    %v118 = vcombine.high %v116, %v116
    %v119 = vcombine.high %v99, %v99
    %v121 = vunpack.c.l.s4 1983009808
    %v122 = vunpack.c.0.s8 %v121
    %v123 = vlaneseq
    %v124 = vshrl.u32 %v123, 7
    %v125 = vsub.s32 %v122, %v124
    %v126 = vrot.slane %v99, %v125
    %v128 = vunpack.c.l.s4 1983009808
    %v129 = vunpack.c.0.s8 %v128
    %v130 = vlaneseq
    %v131 = vshrl.u32 %v130, 7
    %v132 = vsub.s32 %v129, %v131
    %v133 = vrot.slane %v119, %v132
    %v134 = vcombine.high %v126, %v126
    %v135 = vcombine.high %v133, %v133
    %vm144 = vcmask 1041408
    %v145 = vsel %vm144, %v109, 0.0
    %v146 = vsel %vm144, %v117, 0.0
    %v147 = vadd.f32 %v145, %v146
    %v148 = vsel %vm144, %v116, 0.0
    %v149 = vadd.f32 %v147, %v148
    %v150 = vsel %vm144, %v118, 0.0
    %v151 = vadd.f32 %v149, %v150
    %v152 = vsel %vm144, %v126, 0.0
    %v153 = vadd.f32 %v151, %v152
    %v154 = vsel %vm144, %v134, 0.0
    %v155 = vadd.f32 %v153, %v154
    %v156 = vsel %vm144, %v133, 0.0
    %v157 = vadd.f32 %v155, %v156
    %v158 = vsel %vm144, %v135, 0.0
    %v159 = vadd.f32 %v157, %v158
    %160 = vadd.xlane.f32.xlu0 %v159
    %v161 = vpop.xlane.xlu0 %160
    %v162 = vadd.f32 %v97, %v161
    %vm163 = vcmask 1024
    %164 = vst.msk [vmem:[%s2] sm:$0x3] %vm163, %v162
    %v165 = vld [vmem:[%s3] sm:$0x3]
    %v168 = vcombine.high %v87, %v87
    %v170 = vunpack.c.l.s4 1983009808
    %v171 = vunpack.c.0.s8 %v170
    %v172 = vlaneseq
    %v173 = vshrl.u32 %v172, 7
    %v174 = vsub.s32 %v171, %v173
    %v175 = vrot.slane %v87, %v174
    %v177 = vunpack.c.l.s4 1983009808
    %v178 = vunpack.c.0.s8 %v177
    %v179 = vlaneseq
    %v180 = vshrl.u32 %v179, 7
    %v181 = vsub.s32 %v178, %v180
    %v182 = vrot.slane %v168, %v181
    %v183 = vcombine.high %v175, %v175
    %v184 = vcombine.high %v182, %v182
    %v185 = vcombine.high %v88, %v88
    %v187 = vunpack.c.l.s4 1983009808
    %v188 = vunpack.c.0.s8 %v187
    %v189 = vlaneseq
    %v190 = vshrl.u32 %v189, 7
    %v191 = vsub.s32 %v188, %v190
    %v192 = vrot.slane %v88, %v191
    %v194 = vunpack.c.l.s4 1983009808
    %v195 = vunpack.c.0.s8 %v194
    %v196 = vlaneseq
    %v197 = vshrl.u32 %v196, 7
    %v198 = vsub.s32 %v195, %v197
    %v199 = vrot.slane %v185, %v198
    %v200 = vcombine.high %v192, %v192
    %v201 = vcombine.high %v199, %v199
    %v210 = vsel %vm144, %v175, 0.0
    %v211 = vsel %vm144, %v183, 0.0
    %v212 = vadd.f32 %v210, %v211
    %v213 = vsel %vm144, %v182, 0.0
    %v214 = vadd.f32 %v212, %v213
    %v215 = vsel %vm144, %v184, 0.0
    %v216 = vadd.f32 %v214, %v215
    %v217 = vsel %vm144, %v192, 0.0
    %v218 = vadd.f32 %v216, %v217
    %v219 = vsel %vm144, %v200, 0.0
    %v220 = vadd.f32 %v218, %v219
    %v221 = vsel %vm144, %v199, 0.0
    %v222 = vadd.f32 %v220, %v221
    %v223 = vsel %vm144, %v201, 0.0
    %v224 = vadd.f32 %v222, %v223
    %225 = vadd.xlane.f32.xlu0 %v224
    %v226 = vpop.xlane.xlu0 %225
    %v227 = vadd.f32 %v165, %v226
    %228 = vst.msk [vmem:[%s3] sm:$0x3] %vm163, %v227
    %v229 = vld [vmem:[%s4] sm:$0x3]
    %v232 = vcombine.high %v89, %v89
    %v234 = vunpack.c.l.s4 1983009808
    %v235 = vunpack.c.0.s8 %v234
    %v236 = vlaneseq
    %v237 = vshrl.u32 %v236, 7
    %v238 = vsub.s32 %v235, %v237
    %v239 = vrot.slane %v89, %v238
    %v241 = vunpack.c.l.s4 1983009808
    %v242 = vunpack.c.0.s8 %v241
    %v243 = vlaneseq
    %v244 = vshrl.u32 %v243, 7
    %v245 = vsub.s32 %v242, %v244
    %v246 = vrot.slane %v232, %v245
    %v247 = vcombine.high %v239, %v239
    %v248 = vcombine.high %v246, %v246
    %v249 = vcombine.high %v90, %v90
    %v251 = vunpack.c.l.s4 1983009808
    %v252 = vunpack.c.0.s8 %v251
    %v253 = vlaneseq
    %v254 = vshrl.u32 %v253, 7
    %v255 = vsub.s32 %v252, %v254
    %v256 = vrot.slane %v90, %v255
    %v258 = vunpack.c.l.s4 1983009808
    %v259 = vunpack.c.0.s8 %v258
    %v260 = vlaneseq
    %v261 = vshrl.u32 %v260, 7
    %v262 = vsub.s32 %v259, %v261
    %v263 = vrot.slane %v249, %v262
    %v264 = vcombine.high %v256, %v256
    %v265 = vcombine.high %v263, %v263
    %v274 = vsel %vm144, %v239, 0.0
    %v275 = vsel %vm144, %v247, 0.0
    %v276 = vadd.f32 %v274, %v275
    %v277 = vsel %vm144, %v246, 0.0
    %v278 = vadd.f32 %v276, %v277
    %v279 = vsel %vm144, %v248, 0.0
    %v280 = vadd.f32 %v278, %v279
    %v281 = vsel %vm144, %v256, 0.0
    %v282 = vadd.f32 %v280, %v281
    %v283 = vsel %vm144, %v264, 0.0
    %v284 = vadd.f32 %v282, %v283
    %v285 = vsel %vm144, %v263, 0.0
    %v286 = vadd.f32 %v284, %v285
    %v287 = vsel %vm144, %v265, 0.0
    %v288 = vadd.f32 %v286, %v287
    %289 = vadd.xlane.f32.xlu0 %v288
    %v290 = vpop.xlane.xlu0 %289
    %v291 = vadd.f32 %v229, %v290
    %292 = vst.msk [vmem:[%s4] sm:$0x3] %vm163, %v291
  $region17: #{binary_dice_loss.1} parent=0 // pred_fallthru
    _
  %p293 = scmp.gt.s32.totalorder %s92, 1024
  // Predicated region
  $region18: #{binary_dice_loss.1} parent=0 // pred_check
    %p294 = pneg %p293
  $region19: #{binary_dice_loss.1} parent=0 // pred_check_branch
    %296 = sbr.rel (%p294) target = $region21
  $region20: #{binary_dice_loss.1} parent=0 // pred_region
    %v297 = vlaneseq
    %v298 = vand.u32 %v297, 127
    %v299 = vadd.s32 %v298, 128
    %v300 = vadd.s32 %v298, 256
    %v301 = vadd.s32 %v298, 384
    %v302 = vadd.s32 %v298, 512
    %v303 = vadd.s32 %v298, 640
    %v304 = vadd.s32 %v298, 768
    %v305 = vadd.s32 %v298, 896
    %v306 = vstv %s91
    %v307 = vadd.s32 %v298, %v306
    %v308 = vadd.s32 %v299, %v306
    %v309 = vadd.s32 %v300, %v306
    %v310 = vadd.s32 %v301, %v306
    %v311 = vadd.s32 %v302, %v306
    %v312 = vadd.s32 %v303, %v306
    %v313 = vadd.s32 %v304, %v306
    %v314 = vadd.s32 %v305, %v306
    %vm315 = vcmp.lt.s32.totalorder %v307, 1024
    %vm316 = vcmp.lt.s32.totalorder %v308, 1024
    %vm317 = vcmp.lt.s32.totalorder %v309, 1024
    %vm318 = vcmp.lt.s32.totalorder %v310, 1024
    %vm319 = vcmp.lt.s32.totalorder %v311, 1024
    %vm320 = vcmp.lt.s32.totalorder %v312, 1024
    %vm321 = vcmp.lt.s32.totalorder %v313, 1024
    %vm322 = vcmp.lt.s32.totalorder %v314, 1024
    %v325 = vcombine.high %v87, %v87
    %v327 = vunpack.c.l.s4 1983009808
    %v328 = vunpack.c.0.s8 %v327
    %v329 = vlaneseq
    %v330 = vshrl.u32 %v329, 7
    %v331 = vsub.s32 %v328, %v330
    %v332 = vrot.slane %v87, %v331
    %v334 = vunpack.c.l.s4 1983009808
    %v335 = vunpack.c.0.s8 %v334
    %v336 = vlaneseq
    %v337 = vshrl.u32 %v336, 7
    %v338 = vsub.s32 %v335, %v337
    %v339 = vrot.slane %v325, %v338
    %v340 = vcombine.high %v332, %v332
    %v341 = vcombine.high %v339, %v339
    %v342 = vcombine.high %v88, %v88
    %v344 = vunpack.c.l.s4 1983009808
    %v345 = vunpack.c.0.s8 %v344
    %v346 = vlaneseq
    %v347 = vshrl.u32 %v346, 7
    %v348 = vsub.s32 %v345, %v347
    %v349 = vrot.slane %v88, %v348
    %v351 = vunpack.c.l.s4 1983009808
    %v352 = vunpack.c.0.s8 %v351
    %v353 = vlaneseq
    %v354 = vshrl.u32 %v353, 7
    %v355 = vsub.s32 %v352, %v354
    %v356 = vrot.slane %v342, %v355
    %v357 = vcombine.high %v349, %v349
    %v358 = vcombine.high %v356, %v356
    %v367 = vsel %vm315, %v332, 0.0
    %v368 = vsel %vm316, %v340, 0.0
    %v369 = vsel %vm317, %v339, 0.0
    %v370 = vsel %vm318, %v341, 0.0
    %v371 = vsel %vm319, %v349, 0.0
    %v372 = vsel %vm320, %v357, 0.0
    %v373 = vsel %vm321, %v356, 0.0
    %v374 = vsel %vm322, %v358, 0.0
    %v377 = vcombine.high %v89, %v89
    %v379 = vunpack.c.l.s4 1983009808
    %v380 = vunpack.c.0.s8 %v379
    %v381 = vlaneseq
    %v382 = vshrl.u32 %v381, 7
    %v383 = vsub.s32 %v380, %v382
    %v384 = vrot.slane %v89, %v383
    %v386 = vunpack.c.l.s4 1983009808
    %v387 = vunpack.c.0.s8 %v386
    %v388 = vlaneseq
    %v389 = vshrl.u32 %v388, 7
    %v390 = vsub.s32 %v387, %v389
    %v391 = vrot.slane %v377, %v390
    %v392 = vcombine.high %v384, %v384
    %v393 = vcombine.high %v391, %v391
    %v394 = vcombine.high %v90, %v90
    %v396 = vunpack.c.l.s4 1983009808
    %v397 = vunpack.c.0.s8 %v396
    %v398 = vlaneseq
    %v399 = vshrl.u32 %v398, 7
    %v400 = vsub.s32 %v397, %v399
    %v401 = vrot.slane %v90, %v400
    %v403 = vunpack.c.l.s4 1983009808
    %v404 = vunpack.c.0.s8 %v403
    %v405 = vlaneseq
    %v406 = vshrl.u32 %v405, 7
    %v407 = vsub.s32 %v404, %v406
    %v408 = vrot.slane %v394, %v407
    %v409 = vcombine.high %v401, %v401
    %v410 = vcombine.high %v408, %v408
    %v419 = vsel %vm315, %v384, 0.0
    %v420 = vsel %vm316, %v392, 0.0
    %v421 = vsel %vm317, %v391, 0.0
    %v422 = vsel %vm318, %v393, 0.0
    %v423 = vsel %vm319, %v401, 0.0
    %v424 = vsel %vm320, %v409, 0.0
    %v425 = vsel %vm321, %v408, 0.0
    %v426 = vsel %vm322, %v410, 0.0
    %v427 = vld [vmem:[%s2] sm:$0x3]
    %v428 = vmul.f32 %v367, %v419
    %v429 = vmul.f32 %v368, %v420
    %v430 = vmul.f32 %v369, %v421
    %v431 = vmul.f32 %v370, %v422
    %v432 = vmul.f32 %v371, %v423
    %v433 = vmul.f32 %v372, %v424
    %v434 = vmul.f32 %v373, %v425
    %v435 = vmul.f32 %v374, %v426
    %vm436 = vcmask 1041408
    %v437 = vsel %vm436, %v428, 0.0
    %v438 = vsel %vm436, %v429, 0.0
    %v439 = vadd.f32 %v437, %v438
    %v440 = vsel %vm436, %v430, 0.0
    %v441 = vadd.f32 %v439, %v440
    %v442 = vsel %vm436, %v431, 0.0
    %v443 = vadd.f32 %v441, %v442
    %v444 = vsel %vm436, %v432, 0.0
    %v445 = vadd.f32 %v443, %v444
    %v446 = vsel %vm436, %v433, 0.0
    %v447 = vadd.f32 %v445, %v446
    %v448 = vsel %vm436, %v434, 0.0
    %v449 = vadd.f32 %v447, %v448
    %v450 = vsel %vm436, %v435, 0.0
    %v451 = vadd.f32 %v449, %v450
    %452 = vadd.xlane.f32.xlu0 %v451
    %v453 = vpop.xlane.xlu0 %452
    %v454 = vadd.f32 %v427, %v453
    %vm455 = vcmask 1024
    %456 = vst.msk [vmem:[%s2] sm:$0x3] %vm455, %v454
    %v457 = vld [vmem:[%s3] sm:$0x3]
    %v458 = vsel %vm436, %v367, 0.0
    %v459 = vsel %vm436, %v368, 0.0
    %v460 = vadd.f32 %v458, %v459
    %v461 = vsel %vm436, %v369, 0.0
    %v462 = vadd.f32 %v460, %v461
    %v463 = vsel %vm436, %v370, 0.0
    %v464 = vadd.f32 %v462, %v463
    %v465 = vsel %vm436, %v371, 0.0
    %v466 = vadd.f32 %v464, %v465
    %v467 = vsel %vm436, %v372, 0.0
    %v468 = vadd.f32 %v466, %v467
    %v469 = vsel %vm436, %v373, 0.0
    %v470 = vadd.f32 %v468, %v469
    %v471 = vsel %vm436, %v374, 0.0
    %v472 = vadd.f32 %v470, %v471
    %473 = vadd.xlane.f32.xlu0 %v472
    %v474 = vpop.xlane.xlu0 %473
    %v475 = vadd.f32 %v457, %v474
    %476 = vst.msk [vmem:[%s3] sm:$0x3] %vm455, %v475
    %v477 = vld [vmem:[%s4] sm:$0x3]
    %v478 = vsel %vm436, %v419, 0.0
    %v479 = vsel %vm436, %v420, 0.0
    %v480 = vadd.f32 %v478, %v479
    %v481 = vsel %vm436, %v421, 0.0
    %v482 = vadd.f32 %v480, %v481
    %v483 = vsel %vm436, %v422, 0.0
    %v484 = vadd.f32 %v482, %v483
    %v485 = vsel %vm436, %v423, 0.0
    %v486 = vadd.f32 %v484, %v485
    %v487 = vsel %vm436, %v424, 0.0
    %v488 = vadd.f32 %v486, %v487
    %v489 = vsel %vm436, %v425, 0.0
    %v490 = vadd.f32 %v488, %v489
    %v491 = vsel %vm436, %v426, 0.0
    %v492 = vadd.f32 %v490, %v491
    %493 = vadd.xlane.f32.xlu0 %v492
    %v494 = vpop.xlane.xlu0 %493
    %v495 = vadd.f32 %v477, %v494
    %496 = vst.msk [vmem:[%s4] sm:$0x3] %vm455, %v495
  $region21: #{binary_dice_loss.1} parent=0 // pred_fallthru
    _
  // Predicated region
  $region22: #{binary_dice_loss.1} parent=0 // pred_check
    _
  $region23: #{binary_dice_loss.1} parent=0 // pred_check_branch
    %498 = sbr.rel (0) target = $region25
  $region24: #{binary_dice_loss.1} parent=0 // pred_region
    _
  $region25: #{binary_dice_loss.1} parent=0 // pred_fallthru
    _
  // Predicated region
  $region26: #{binary_dice_loss.1} parent=0 // pred_check
    _
  $region27: #{binary_dice_loss.1} parent=0 // pred_check_branch
    %500 = sbr.rel (0) target = $region29
  $region28: #{binary_dice_loss.1} parent=0 // pred_region
    _
  $region29: #{binary_dice_loss.1} parent=0 // pred_fallthru
    _
  // Predicated region
  $region30: #{binary_dice_loss.1} parent=0 // pred_check
    _
  $region31: #{binary_dice_loss.1} parent=0 // pred_check_branch
    %502 = sbr.rel (0) target = $region33
  $region32: #{binary_dice_loss.1} parent=0 // pred_region
    _
  $region33: #{binary_dice_loss.1} parent=0 // pred_fallthru
    _
  // Predicated region
  $region34: #{binary_dice_loss.1} parent=0 // pred_check
    _
  $region35: #{binary_dice_loss.1} parent=0 // pred_check_branch
    %504 = sbr.rel (0) target = $region37
  $region36: #{binary_dice_loss.1} parent=0 // pred_region
    _
  $region37: #{binary_dice_loss.1} parent=0 // pred_fallthru
    _
  // Predicated region
  $region38: #{binary_dice_loss.1} parent=0 // pred_check
    _
  $region39: #{binary_dice_loss.1} parent=0 // pred_check_branch
    %506 = sbr.rel (0) target = $region41
  $region40: #{binary_dice_loss.1} parent=0 // pred_region
    _
  $region41: #{binary_dice_loss.1} parent=0 // pred_fallthru
    _
  // Predicated region
  $region42: #{binary_dice_loss.1} parent=0 // pred_check
    _
  $region43: #{binary_dice_loss.1} parent=0 // pred_check_branch
    %508 = sbr.rel (0) target = $region45
  $region44: #{binary_dice_loss.1} parent=0 // pred_region
    _
  $region45: #{binary_dice_loss.1} parent=0 // pred_fallthru
    _

</llo_original>
